<compile_context>
chip_gen: v5e
topology: v5e:2x2
jax: 0.10.0
libtpu: 0.0.40
codegen_flags: <defaults>
</compile_context>

<pallas_src>
import math
import functools

import jax
import jax.numpy as jnp
from jax.experimental import pallas as pl
from jax.experimental.pallas import tpu as pltpu


# ---------------------------------------------------------------------------
# Parameter setup (plain JAX): sinusoidal table, shape (max_len, d_model)
# ---------------------------------------------------------------------------
def _make_pe_table(max_len: int, d_model: int) -> jnp.ndarray:
    position = jnp.arange(max_len, dtype=jnp.float32)[:, None]            # (L, 1)
    div_term = jnp.exp(
        jnp.arange(0, d_model, 2, dtype=jnp.float32)
        * (-math.log(10000.0) / d_model)
    )                                                                     # (D/2,)
    pe = jnp.zeros((max_len, d_model), dtype=jnp.float32)
    pe = pe.at[:, 0::2].set(jnp.sin(position * div_term))
    pe = pe.at[:, 1::2].set(jnp.cos(position * div_term))
    return pe


# ---------------------------------------------------------------------------
# Tile-size selection: biggest block ~target_bytes, multiples of 8 (or full)
# ---------------------------------------------------------------------------
def _fit_extent(extent: int, unit_bytes: int, target_bytes: int) -> int:
    if extent <= 8 or extent * unit_bytes <= target_bytes:
        return int(extent)
    n = (target_bytes // max(unit_bytes, 1)) // 8 * 8
    return int(max(8, min(extent, n)))


def _choose_tiles(S: int, B: int, D: int, itemsize: int,
                  target_bytes: int) -> tuple[int, int]:
    # Pick tB first (assuming >= 8 seq rows per block), then tS given tB.
    tB = _fit_extent(B, D * itemsize * 8, target_bytes)
    tS = _fit_extent(S, tB * D * itemsize, target_bytes)
    return tS, tB


# ---------------------------------------------------------------------------
# Pallas kernels
# ---------------------------------------------------------------------------
def _pe_add_kernel(x_ref, pe_ref, o_ref):
    # x_ref / o_ref : (tS, tB, D)    pe_ref : (tS, D)
    # Load the pe tile first (Refs cannot be indexed with None), then
    # broadcast it over the batch (sublane) axis.
    pe = pe_ref[...]                                          # (tS, D)
    o_ref[...] = (x_ref[...] + pe[:, None, :]).astype(o_ref.dtype)


def _pe_add_dropout_kernel(seed_ref, x_ref, pe_ref, o_ref, *, p: float):
    # Train-mode path: inverted dropout with the TPU hardware PRNG.
    # Unique seed per grid block; caller should salt `seed` per layer/step.
    i = pl.program_id(0)
    j = pl.program_id(1)
    nj = pl.num_programs(1)
    pltpu.prng_seed(seed_ref[0] + i * nj + j)

    pe = pe_ref[...]                                          # (tS, D)
    y = (x_ref[...] + pe[:, None, :]).astype(jnp.float32)

    # Unsigned integer-threshold compare: P(bits < thresh) == p exactly.
    bits = pltpu.bitcast(pltpu.prng_random_bits(y.shape), jnp.uint32)
    drop_thresh = jnp.uint32(min(int(round(p * (2.0 ** 32))), 2 ** 32 - 1))
    keep = bits >= drop_thresh
    scale = jnp.float32(1.0 / (1.0 - p))
    o_ref[...] = jnp.where(keep, y * scale, 0.0).astype(o_ref.dtype)


# ---------------------------------------------------------------------------
# Wrapper (parameter holder + per-shape cached pallas_call)
# ---------------------------------------------------------------------------
class PositionalEncodingPallas:
    def __init__(self, d_model: int, dropout: float = 0.1, max_len: int = 5000,
                 target_block_bytes: int = 2 * 1024 * 1024):
        self.d_model = d_model
        self.p = float(dropout)
        self.target_block_bytes = int(target_block_bytes)
        self.pe = _make_pe_table(max_len, d_model)            # (max_len, d_model)
        self._fns = {}                                        # (shape, dtype, train) -> jitted fn

    def _build(self, S: int, B: int, D: int, dtype, use_dropout: bool):
        itemsize = jnp.dtype(dtype).itemsize
        tS, tB = _choose_tiles(S, B, D, itemsize, self.target_block_bytes)
        grid = (pl.cdiv(S, tS), pl.cdiv(B, tB))

        # index_maps accept (*grid_idx, *scalar_prefetch_refs) -> use *_.
        x_spec = pl.BlockSpec((tS, tB, D), lambda i, j, *_: (i, j, 0))
        pe_spec = pl.BlockSpec((tS, D), lambda i, j, *_: (i, 0))
        out_spec = pl.BlockSpec((tS, tB, D), lambda i, j, *_: (i, j, 0))
        out_shape = jax.ShapeDtypeStruct((S, B, D), dtype)

        # Both axes are independent -> "parallel" (v7x megacore sharding;
        # neutral on single-core v5e/v6e).  ~2 MiB blocks keep the double
        # buffers inside every chip's scoped-VMEM default, so no explicit
        # vmem_limit_bytes is needed.
        params = pltpu.CompilerParams(
            dimension_semantics=("parallel", "parallel"))

        if not use_dropout:
            fn = pl.pallas_call(
                _pe_add_kernel,
                out_shape=out_shape,
                grid_spec=pltpu.PrefetchScalarGridSpec(
                    num_scalar_prefetch=0,
                    grid=grid,
                    in_specs=[x_spec, pe_spec],
                    out_specs=out_spec,
                ),
                compiler_params=params,
            )
        else:
            fn = pl.pallas_call(
                functools.partial(_pe_add_dropout_kernel, p=self.p),
                out_shape=out_shape,
                grid_spec=pltpu.PrefetchScalarGridSpec(
                    num_scalar_prefetch=1,        # seed lands in SMEM
                    grid=grid,
                    in_specs=[x_spec, pe_spec],
                    out_specs=out_spec,
                ),
                compiler_params=params,
            )
        return jax.jit(fn)

    def __call__(self, x: jnp.ndarray, *, training: bool = False,
                 seed: int = 0) -> jnp.ndarray:
        # x: (S, B, D), seq-first — same layout as the PyTorch module.
        S, B, D = x.shape
        assert D == self.d_model, "d_model mismatch"
        use_dropout = bool(training and self.p > 0.0)

        key = (S, B, D, jnp.dtype(x.dtype).name, use_dropout)
        if key not in self._fns:
            self._fns[key] = self._build(S, B, D, x.dtype, use_dropout)
        fn = self._fns[key]

        pe_slice = self.pe[:S, :]                              # (S, D)
        if not use_dropout:
            return fn(x, pe_slice)
        seed_arr = jnp.array([seed], dtype=jnp.int32)
        return fn(seed_arr, x, pe_slice)


# ---------------------------------------------------------------------------
# Demo / self-test
# ---------------------------------------------------------------------------
if __name__ == "__main__":
    # 1) tiny shape, single block (eval mode == module.eval() in torch)
    S, B, D = 8, 2, 32
    x = jax.random.normal(jax.random.PRNGKey(0), (S, B, D), dtype=jnp.float32)
    module = PositionalEncodingPallas(d_model=D, dropout=0.1, max_len=5000)

    out = jax.block_until_ready(module(x, training=False))
    ref = x + module.pe[:S, :][:, None, :]
    assert out.shape == (S, B, D)
    assert jnp.allclose(out, ref, atol=1e-6), "mismatch vs. reference (case 1)"

    # 2) multi-block pipelined path: tiny target block size forces a (3, 1)
    #    grid over (seq, batch) with lane-dense (8, 128) blocks.
    S2, B2, D2 = 24, 8, 128
    x2 = jax.random.normal(jax.random.PRNGKey(1), (S2, B2, D2),
                           dtype=jnp.float32)
    module2 = PositionalEncodingPallas(d_model=D2, dropout=0.1, max_len=5000,
                                       target_block_bytes=4096)
    out2 = jax.block_until_ready(module2(x2, training=False))
    ref2 = x2 + module2.pe[:S2, :][:, None, :]
    assert out2.shape == (S2, B2, D2)
    assert jnp.allclose(out2, ref2, atol=1e-6), "mismatch vs. reference (case 2)"

    # TODO(synk): the train-mode dropout kernel is implemented above but not
    # exercised here; it matches torch's dropout distributionally, not its
    # exact RNG stream.

    print("KERNEL_OK")
</pallas_src>

<mosaic_0001>
module attributes {stable_mosaic.version = 11 : i64} {
  func.func @_pe_add_kernel(%arg0: i32, %arg1: i32, %arg2: memref<8x2x32xf32, #tpu.memory_space<vmem>>, %arg3: memref<8x32xf32, #tpu.memory_space<vmem>>, %arg4: memref<8x2x32xf32, #tpu.memory_space<vmem>>) attributes {dimension_semantics = [#tpu.dimension_semantics<parallel>, #tpu.dimension_semantics<parallel>], iteration_bounds = array<i64: 1, 1>, scalar_prefetch = 0 : i64, scratch_operands = 0 : i64, tpu.core_type = #tpu.core_type<tc>, window_params = [{transform_indices = @transform_0, window_bounds = array<i64: 8, 2, 32>}, {transform_indices = @transform_1, window_bounds = array<i64: 8, 32>}, {transform_indices = @transform_2, window_bounds = array<i64: 8, 2, 32>}]} {
    %c0 = arith.constant 0 : index
    %c0_0 = arith.constant 0 : index
    %0 = vector.load %arg3[%c0, %c0_0] : memref<8x32xf32, #tpu.memory_space<vmem>>, vector<8x32xf32>
    %c0_1 = arith.constant 0 : index
    %c0_2 = arith.constant 0 : index
    %c0_3 = arith.constant 0 : index
    %1 = vector.load %arg2[%c0_1, %c0_2, %c0_3] : memref<8x2x32xf32, #tpu.memory_space<vmem>>, vector<8x2x32xf32>
    %2 = vector.shape_cast %0 : vector<8x32xf32> to vector<8x1x32xf32>
    %3 = vector.broadcast %2 : vector<8x1x32xf32> to vector<8x2x32xf32>
    %4 = arith.addf %1, %3 : vector<8x2x32xf32>
    %c0_4 = arith.constant 0 : index
    %c0_5 = arith.constant 0 : index
    %c0_6 = arith.constant 0 : index
    %5 = vector.load %arg4[%c0_4, %c0_5, %c0_6] : memref<8x2x32xf32, #tpu.memory_space<vmem>>, vector<8x2x32xf32>
    tpu.vector_store %arg4[%c0_4, %c0_5, %c0_6], %4 {strides = array<i32>} : memref<8x2x32xf32, #tpu.memory_space<vmem>>, vector<8x2x32xf32>,
    return
  }
  func.func @transform_0(%arg0: i32, %arg1: i32) -> (i32, i32, i32) {
    %c0_i32 = arith.constant 0 : i32
    %c0_i32_0 = arith.constant 0 : i32
    return %arg0, %arg1, %c0_i32 : i32, i32, i32
  }
  func.func @transform_1(%arg0: i32, %arg1: i32) -> (i32, i32) {
    %c0_i32 = arith.constant 0 : i32
    %c0_i32_0 = arith.constant 0 : i32
    return %arg0, %c0_i32 : i32, i32
  }
  func.func @transform_2(%arg0: i32, %arg1: i32) -> (i32, i32, i32) {
    %c0_i32 = arith.constant 0 : i32
    %c0_i32_0 = arith.constant 0 : i32
    return %arg0, %arg1, %c0_i32 : i32, i32, i32
  }
}

</mosaic_0001>

<llo_original>
// kernel: tpu_custom_call.1
$region0: #{tpu_custom_call.1}
  #allocation0 [shape = 'u32[]', space=smem, size = 0x4, offset = 0x4, fixed_abs, tag = 'smem constant byte address 0x4 - core index']
  #allocation1 [shape = 'u32[72,128]{1,0:T(1,128)}', space=vmem, size = 0x9000, scoped, tag = 'internal scratch']
  %s0 = inlined_call_operand.hbm [shape: f32[8,2,32], index: 0, kind: input, shape index: {}]
  %s1 = inlined_call_operand.hbm [shape: f32[8,32], index: 1, kind: input, shape index: {}]
  %s2 = inlined_call_operand.hbm [shape: f32[8,2,32], index: 2, kind: output, shape index: {}]
  %s3 = sld [smem:[#allocation0]]
  $region26: #{tpu_custom_call.1} parent=0
    _
  %s5 = ssub.s32 1, %s3
  %s6 = scalar_select 0, %s5, %s3
  $region1: #{tpu_custom_call.1} parent=0
    #allocation2 [shape = 'u8[8192]{0}', space=vmem, size = 0x2000, scoped, tag = 'input window, operand 0, single buffered']
    #allocation3 [shape = 's32[1]{0}', space=sflag, size = 0x4, scoped, tag = 'scoped memory for tpu_custom_call.1']
    #allocation4 [shape = 's32[1]{0}', space=sflag, size = 0x4, scoped, tag = 'scoped memory for tpu_custom_call.1']
    #allocation5 [shape = 'u8[4096]{0}', space=vmem, size = 0x1000, scoped, tag = 'input window, operand 1, single buffered']
    #allocation6 [shape = 's32[1]{0}', space=sflag, size = 0x4, scoped, tag = 'scoped memory for tpu_custom_call.1']
    #allocation7 [shape = 'u8[8192]{0}', space=vmem, size = 0x2000, scoped, tag = 'output window, operand 0, single buffered']
    %7 = vsyncpa [#allocation3], 0
    %8 = vsyncpa [#allocation6], 0
    %9 = vsyncpa [#allocation4], 0
    // Predicated region
    $region2: #{tpu_custom_call.1} parent=1 // pred_check
      _
    $region3: #{tpu_custom_call.1} parent=1 // pred_check_branch
      %11 = sbr.rel (0) target = $region5
    $region4: #{tpu_custom_call.1} parent=1 // pred_region
      %13 = vsyncadd [#allocation3], 0
      %s14 = sshll.u32 %s0, 4
      %s15 = int_to_ptr.hbm [resolvable:$true] %s14
      %s16 = sshll.u32 [#allocation2], 4
      %s17 = int_to_ptr.vmem [resolvable:$true] %s16
      %22 = dma.hbm_to_vmem [thread:$0]  %s15, 256, %s17, [#allocation3], 32, 32, 2
    $region5: #{tpu_custom_call.1} parent=1 // pred_fallthru
      _
    // Predicated region
    $region6: #{tpu_custom_call.1} parent=1 // pred_check
      _
    $region7: #{tpu_custom_call.1} parent=1 // pred_check_branch
      %24 = sbr.rel (0) target = $region9
    $region8: #{tpu_custom_call.1} parent=1 // pred_region
      %26 = vsyncadd [#allocation6], 0
      %s28 = sshll.u32 %s1, 4
      %s29 = int_to_ptr.hbm [resolvable:$true] %s28
      %s30 = sshll.u32 [#allocation5], 4
      %s31 = int_to_ptr.vmem [resolvable:$true] %s30
      %33 = dma.hbm_to_vmem [thread:$0]  %s29, 128, %s31, [#allocation6]
    $region9: #{tpu_custom_call.1} parent=1 // pred_fallthru
      _
    // Predicated region
    $region10: #{tpu_custom_call.1} parent=1 // pred_check
      _
    $region11: #{tpu_custom_call.1} parent=1 // pred_check_branch
      %35 = sbr.rel (0) target = $region13
    $region12: #{tpu_custom_call.1} parent=1 // pred_region
      %37 = dma.done [#allocation3], 256
    $region13: #{tpu_custom_call.1} parent=1 // pred_fallthru
      _
    // Predicated region
    $region14: #{tpu_custom_call.1} parent=1 // pred_check
      _
    $region15: #{tpu_custom_call.1} parent=1 // pred_check_branch
      %39 = sbr.rel (0) target = $region17
    $region16: #{tpu_custom_call.1} parent=1 // pred_region
      %41 = dma.done [#allocation6], 128
    $region17: #{tpu_custom_call.1} parent=1 // pred_fallthru
      _
    %v42 = vld [vmem:[#allocation5] sm:$0xff]
    %v43 = vld [vmem:[#allocation2] sm:$0x3]
    %v44 = vld [vmem:[#allocation2 + $0x2] sm:$0x3]
    %v45 = vld [vmem:[#allocation2 + $0x4] sm:$0x3]
    %v46 = vld [vmem:[#allocation2 + $0x6] sm:$0x3]
    %v47 = vld [vmem:[#allocation2 + $0x8] sm:$0x3]
    %v48 = vld [vmem:[#allocation2 + $0xa] sm:$0x3]
    %v49 = vld [vmem:[#allocation2 + $0xc] sm:$0x3]
    %v50 = vld [vmem:[#allocation2 + $0xe] sm:$0x3]
    %v52 = vrot.slane %v42, 1
    %v53 = vrot.slane %v42, 2
    %v54 = vrot.slane %v42, 3
    %v55 = vrot.slane %v42, 4
    %v56 = vrot.slane %v42, 5
    %v57 = vrot.slane %v42, 6
    %v58 = vrot.slane %v42, 7
    %v59 = vperm.slane %v42, 0
    %v60 = vperm.slane %v52, 0
    %v61 = vperm.slane %v53, 0
    %v62 = vperm.slane %v54, 0
    %v63 = vperm.slane %v55, 0
    %v64 = vperm.slane %v56, 0
    %v65 = vperm.slane %v57, 0
    %v66 = vperm.slane %v58, 0
    %v75 = vadd.f32 %v43, %v59
    %v76 = vadd.f32 %v44, %v60
    %v77 = vadd.f32 %v45, %v61
    %v78 = vadd.f32 %v46, %v62
    %v79 = vadd.f32 %v47, %v63
    %v80 = vadd.f32 %v48, %v64
    %v81 = vadd.f32 %v49, %v65
    %v82 = vadd.f32 %v50, %v66
    %vm83 = vcmask 254976
    %84 = vst.msk [vmem:[#allocation7] sm:$0x3] %vm83, %v75
    %85 = vst.msk [vmem:[#allocation7 + $0x2] sm:$0x3] %vm83, %v76
    %86 = vst.msk [vmem:[#allocation7 + $0x4] sm:$0x3] %vm83, %v77
    %87 = vst.msk [vmem:[#allocation7 + $0x6] sm:$0x3] %vm83, %v78
    %88 = vst.msk [vmem:[#allocation7 + $0x8] sm:$0x3] %vm83, %v79
    %89 = vst.msk [vmem:[#allocation7 + $0xa] sm:$0x3] %vm83, %v80
    %90 = vst.msk [vmem:[#allocation7 + $0xc] sm:$0x3] %vm83, %v81
    %91 = vst.msk [vmem:[#allocation7 + $0xe] sm:$0x3] %vm83, %v82
    // Predicated region
    $region18: #{tpu_custom_call.1} parent=1 // pred_check
      _
    $region19: #{tpu_custom_call.1} parent=1 // pred_check_branch
      %93 = sbr.rel (0) target = $region21
    $region20: #{tpu_custom_call.1} parent=1 // pred_region
      %95 = vsyncadd [#allocation4], 0
      %s96 = sshll.u32 [#allocation7], 4
      %s97 = int_to_ptr.vmem [resolvable:$true] %s96
      %s98 = sshll.u32 %s2, 4
      %s99 = int_to_ptr.hbm [resolvable:$true] %s98
      %104 = dma.vmem_to_hbm [thread:$0]  %s97, 256, %s99, [#allocation4], 32, 32, 2
    $region21: #{tpu_custom_call.1} parent=1 // pred_fallthru
      _
    // Predicated region
    $region22: #{tpu_custom_call.1} parent=1 // pred_check
      _
    $region23: #{tpu_custom_call.1} parent=1 // pred_check_branch
      %106 = sbr.rel (0) target = $region25
    $region24: #{tpu_custom_call.1} parent=1 // pred_region
      %108 = dma.done [#allocation4], 256
    $region25: #{tpu_custom_call.1} parent=1 // pred_fallthru
      _
    %109 = vsyncpa [#allocation3], 1
    %110 = vsyncpa [#allocation6], 1
    %111 = vsyncpa [#allocation4], 1

</llo_original>
